<compile_context>
chip_gen: v5e
topology: v5e:2x2
jax: 0.10.0
libtpu: 0.0.40
codegen_flags: <defaults>
</compile_context>

<pallas_src>
import jax
import jax.numpy as jnp
from jax.experimental import pallas as pl
from jax.experimental.pallas import tpu as pltpu  # noqa: F401  (TPU backend)

# Static problem sizes implied by the PyTorch module.
_M, _K, _N = 2, 2, 2


def _addmm_cat_double_kernel(p_ref, o_ref):
    # p_ref: (3*_M, _K) packed as rows [x; a; b]
    x = p_ref[0:_M, :]                    # (2, 2)
    a = p_ref[_M:2 * _M, :]               # (2, 2)
    b = p_ref[2 * _M:3 * _M, :]           # (2, 2)

    # k=2 contraction on the VPU (no MXU fill/drain for a 16-FLOP matmul).
    ab = a[:, 0:1] * b[0:1, :] + a[:, 1:2] * b[1:2, :]   # (2, 2)

    # Fold `out + out` into a single scale, store the same tile twice
    # (avoids the lane-axis concatenate / relayout).
    t2 = (x + ab) * 2.0                   # (2, 2)
    o_ref[:, 0:_N] = t2
    o_ref[:, _N:2 * _N] = t2


def addmm_cat_double(x, a, b):
    assert x.shape == (_M, _K) and a.shape == (_M, _K) and b.shape == (_K, _N)
    # One packed input -> one input DMA descriptor instead of three.
    packed = jnp.concatenate([x, a, b], axis=0)          # (6, 2)
    out_shape = jax.ShapeDtypeStruct((_M, 2 * _N), x.dtype)
    return pl.pallas_call(
        _addmm_cat_double_kernel,
        out_shape=out_shape,
        # Tiny arrays: block == full array (allowed), single grid point.
        in_specs=[pl.BlockSpec(packed.shape, lambda: (0, 0))],
        out_specs=pl.BlockSpec((_M, 2 * _N), lambda: (0, 0)),
    )(packed)


if __name__ == "__main__":
    key = jax.random.PRNGKey(0)
    kx, ka, kb = jax.random.split(key, 3)

    # Module input: torch.randn(2, 2)  (standard normal)
    x = jax.random.normal(kx, (_M, _K), dtype=jnp.float32)
    # Deterministic stand-ins for torch.rand(2, 2) (uniform [0, 1))
    a = jax.random.uniform(ka, (_M, _K), dtype=jnp.float32)
    b = jax.random.uniform(kb, (_K, _N), dtype=jnp.float32)

    out = addmm_cat_double(x, a, b)
    jax.block_until_ready(out)

    # Reference check in plain JAX
    t_ref = x + a @ b
    ref = 2.0 * jnp.concatenate([t_ref, t_ref], axis=1)
    assert out.shape == (_M, 2 * _N)
    assert jnp.allclose(out, ref, atol=1e-5, rtol=1e-5)

    print("KERNEL_OK")
</pallas_src>

<mosaic_0001>
module attributes {stable_mosaic.version = 11 : i64} {
  func.func @_addmm_cat_double_kernel(%arg0: memref<6x2xf32, #tpu.memory_space<vmem>>, %arg1: memref<2x4xf32, #tpu.memory_space<vmem>>) attributes {dimension_semantics = [], scalar_prefetch = 0 : i64, scratch_operands = 0 : i64, tpu.core_type = #tpu.core_type<tc>} {
    %c0 = arith.constant 0 : index
    %c0_0 = arith.constant 0 : index
    %0 = vector.load %arg0[%c0, %c0_0] : memref<6x2xf32, #tpu.memory_space<vmem>>, vector<2x2xf32>
    %c2 = arith.constant 2 : index
    %c0_1 = arith.constant 0 : index
    %1 = vector.load %arg0[%c2, %c0_1] : memref<6x2xf32, #tpu.memory_space<vmem>>, vector<2x2xf32>
    %c4 = arith.constant 4 : index
    %c0_2 = arith.constant 0 : index
    %2 = vector.load %arg0[%c4, %c0_2] : memref<6x2xf32, #tpu.memory_space<vmem>>, vector<2x2xf32>
    %3 = vector.extract_strided_slice %1 {offsets = [0, 0], sizes = [2, 1], strides = [1, 1]} : vector<2x2xf32> to vector<2x1xf32>
    %4 = vector.extract_strided_slice %2 {offsets = [0, 0], sizes = [1, 2], strides = [1, 1]} : vector<2x2xf32> to vector<1x2xf32>
    %5 = vector.broadcast %3 : vector<2x1xf32> to vector<2x2xf32>
    %6 = vector.broadcast %4 : vector<1x2xf32> to vector<2x2xf32>
    %7 = arith.mulf %5, %6 : vector<2x2xf32>
    %8 = vector.extract_strided_slice %1 {offsets = [0, 1], sizes = [2, 1], strides = [1, 1]} : vector<2x2xf32> to vector<2x1xf32>
    %9 = vector.extract_strided_slice %2 {offsets = [1, 0], sizes = [1, 2], strides = [1, 1]} : vector<2x2xf32> to vector<1x2xf32>
    %10 = vector.broadcast %8 : vector<2x1xf32> to vector<2x2xf32>
    %11 = vector.broadcast %9 : vector<1x2xf32> to vector<2x2xf32>
    %12 = arith.mulf %10, %11 : vector<2x2xf32>
    %13 = arith.addf %7, %12 : vector<2x2xf32>
    %14 = arith.addf %0, %13 : vector<2x2xf32>
    %cst = arith.constant 2.000000e+00 : f32
    %15 = vector.broadcast %cst : f32 to vector<2x2xf32>
    %16 = arith.mulf %14, %15 : vector<2x2xf32>
    %c0_3 = arith.constant 0 : index
    %c0_4 = arith.constant 0 : index
    %17 = vector.load %arg1[%c0_3, %c0_4] : memref<2x4xf32, #tpu.memory_space<vmem>>, vector<2x2xf32>
    tpu.vector_store %arg1[%c0_3, %c0_4], %16 {strides = array<i32>} : memref<2x4xf32, #tpu.memory_space<vmem>>, vector<2x2xf32>,
    %c0_5 = arith.constant 0 : index
    %c2_6 = arith.constant 2 : index
    %18 = vector.load %arg1[%c0_5, %c2_6] : memref<2x4xf32, #tpu.memory_space<vmem>>, vector<2x2xf32>
    tpu.vector_store %arg1[%c0_5, %c2_6], %16 {strides = array<i32>} : memref<2x4xf32, #tpu.memory_space<vmem>>, vector<2x2xf32>,
    return
  }
}

</mosaic_0001>

<llo_original>
// kernel: tpu_custom_call.1
$region0: #{tpu_custom_call.1}
  #allocation0 [shape = 'u32[]', space=smem, size = 0x4, offset = 0x4, fixed_abs, tag = 'smem constant byte address 0x4 - core index']
  #allocation1 [shape = 'u32[72,128]{1,0:T(1,128)}', space=vmem, size = 0x9000, scoped, tag = 'internal scratch']
  %s0 = inlined_call_operand.vmem [shape: f32[6,2], index: 0, kind: input, shape index: {}]
  %s1 = inlined_call_operand.hbm [shape: f32[2,4], index: 1, kind: output, shape index: {}]
  %s2 = sld [smem:[#allocation0]]
  $region14: #{tpu_custom_call.1} parent=0
    _
  %s4 = ssub.s32 1, %s2
  %s5 = scalar_select 0, %s4, %s2
  $region1: #{tpu_custom_call.1} parent=0
    #allocation2 [shape = 'u8[1024]{0}', space=vmem, size = 0x400, scoped, tag = 'output window, operand 0, single buffered']
    #allocation3 [shape = 's32[1]{0}', space=sflag, size = 0x4, scoped, tag = 'scoped memory for tpu_custom_call.1']
    %6 = vsyncpa [#allocation3], 0
    // Predicated region
    $region2: #{tpu_custom_call.1} parent=1 // pred_check
      _
    $region3: #{tpu_custom_call.1} parent=1 // pred_check_branch
      %8 = sbr.rel (0) target = $region5
    $region4: #{tpu_custom_call.1} parent=1 // pred_region
      _
    $region5: #{tpu_custom_call.1} parent=1 // pred_fallthru
      _
    %v9 = vld [vmem:[%s0] sm:$0x3]
    %v10 = vld [vmem:[%s0 + $0x2] sm:$0x3]
    %v11 = vld [vmem:[%s0 + $0x4] sm:$0x3]
    %13 = vset.pattern.permute.xlu0 0
    %14 = vperm.xlu0 %13, %v10
    %v15 = vpop.permute.xlu0 %14
    %v17 = vperm.slane %v11, 0
    %v18 = vmul.f32 %v15, %v17
    %19 = vset.pattern.permute.xlu0 1
    %20 = vperm.xlu0 %19, %v10
    %v21 = vpop.permute.xlu0 %20
    %v23 = vperm.slane %v11, 1
    %v24 = vmul.f32 %v21, %v23
    %v25 = vadd.f32 %v18, %v24
    %v26 = vadd.f32 %v9, %v25
    %v27 = vmul.f32 %v26, 2.0
    %vm28 = vcmask 9216
    %29 = vst.msk [vmem:[#allocation2] sm:$0x3] %vm28, %v27
    %31 = vrot.lane.b32.xlu0 %v27, 2
    %v32 = vpop.permute.xlu0 %31
    %vm34 = vcmask 25616
    %35 = vst.msk [vmem:[#allocation2] sm:$0x3] %vm34, %v32
    // Predicated region
    $region6: #{tpu_custom_call.1} parent=1 // pred_check
      _
    $region7: #{tpu_custom_call.1} parent=1 // pred_check_branch
      %37 = sbr.rel (0) target = $region9
    $region8: #{tpu_custom_call.1} parent=1 // pred_region
      %39 = vsyncadd [#allocation3], 0
      %s41 = sshll.u32 [#allocation2], 4
      %s42 = int_to_ptr.vmem [resolvable:$true] %s41
      %s43 = sshll.u32 %s1, 4
      %s44 = int_to_ptr.hbm [resolvable:$true] %s43
      %46 = dma.vmem_to_hbm [thread:$0]  %s42, 32, %s44, [#allocation3]
    $region9: #{tpu_custom_call.1} parent=1 // pred_fallthru
      _
    // Predicated region
    $region10: #{tpu_custom_call.1} parent=1 // pred_check
      _
    $region11: #{tpu_custom_call.1} parent=1 // pred_check_branch
      %48 = sbr.rel (0) target = $region13
    $region12: #{tpu_custom_call.1} parent=1 // pred_region
      %50 = dma.done [#allocation3], 32
    $region13: #{tpu_custom_call.1} parent=1 // pred_fallthru
      _
    %51 = vsyncpa [#allocation3], 1

</llo_original>
